<compile_context>
chip_gen: v7x
topology: tpu7x:2x2x1
jax: 0.10.0
libtpu: 0.0.40
codegen_flags: <defaults>
</compile_context>

<pallas_src>
import jax
import jax.numpy as jnp
from jax.experimental import pallas as pl
from jax.experimental.pallas import tpu as pltpu


def concat_combine_kernel(h_ref, f_ref, cb_ref,
                          we_ref, w1h_ref, w1f_ref, b1_ref, w2_ref, b2_ref,
                          o_ref):
    cdt = we_ref.dtype  # compute (MXU operand) dtype, e.g. bf16

    # In-kernel cast of the f32 activation tiles (no wrapper-side HBM copies).
    h = h_ref[...].astype(cdt)
    f = f_ref[...].astype(cdt)

    # --- enricher: ReLU(f @ We + cb) with cb = categories @ We + be folded per batch ---
    feat = jnp.dot(f, we_ref[...], preferred_element_type=jnp.float32)
    feat = jnp.maximum(feat + cb_ref[...], 0.0).astype(cdt)

    # --- layer 1 of `out`: Linear(H+F, W) on concat([hidden, feat]) -> split matmul ---
    x = (jnp.dot(h, w1h_ref[...], preferred_element_type=jnp.float32)
         + jnp.dot(feat, w1f_ref[...], preferred_element_type=jnp.float32)
         + b1_ref[...])
    # Dropout (identity in eval) then ReLU (activation=True)
    x = jnp.maximum(x, 0.0).astype(cdt)

    # --- layer 2 of `out`: Linear(W, O); trailing Dropout is identity in eval ---
    # Compact O columns: the store is a (tile_s, O) block, no lane padding in HBM.
    o_ref[...] = (jnp.dot(x, w2_ref[...], preferred_element_type=jnp.float32)
                  + b2_ref[...]).astype(o_ref.dtype)


def _round_up(x, m):
    return ((x + m - 1) // m) * m


def prepare_params(params, compute_dtype=jnp.bfloat16):
    """One-time (per checkpoint) preprocessing: lane padding + bf16 weight casts."""
    We, be, W1h, W1f, b1, W2, b2 = params
    F = We.shape[0]
    H, W = W1h.shape
    O = W2.shape[1]
    f32 = jnp.float32

    # Internal dims padded to lane multiples of 128 (output dim O stays compact).
    Fp, Wp = _round_up(F, 128), _round_up(W, 128)

    We_p = jnp.zeros((F, Fp), f32).at[:, :F].set(We.astype(f32))
    be_p = jnp.zeros((Fp,), f32).at[:F].set(be.astype(f32))
    W1h_p = jnp.zeros((H, Wp), f32).at[:, :W].set(W1h.astype(f32))
    W1f_p = jnp.zeros((Fp, Wp), f32).at[:F, :W].set(W1f.astype(f32))
    b1_p = jnp.zeros((1, Wp), f32).at[0, :W].set(b1.astype(f32))
    W2_p = jnp.zeros((Wp, O), f32).at[:W, :].set(W2.astype(f32))
    b2_p = jnp.asarray(b2, f32).reshape(1, O)

    return dict(
        We_f32=We_p, be_f32=be_p,                       # used for the per-call cb matvec
        We=We_p.astype(compute_dtype),
        W1h=W1h_p.astype(compute_dtype),
        W1f=W1f_p.astype(compute_dtype),
        b1=b1_p,
        W2=W2_p.astype(compute_dtype),
        b2=b2_p,
        dims=(H, F, Fp, W, Wp, O),
    )


def _choose_tile(S, B, tile_rows):
    """Row tile over the sequence dim: big (amortize per-step overhead), multiple of 8
    (or the full S), and if B == 1 split into >= 2 tiles so both v7x cores get work."""
    if S <= tile_rows:
        tile_s = S
    else:
        tile_s = max(8, (int(tile_rows) // 8) * 8)
    if B == 1 and tile_s >= S and S > 8:
        tile_s = min(S, max(8, _round_up((S + 1) // 2, 8)))
    return tile_s


def concat_combine(hidden, features, categories, prepared, *, tile_rows=1024):
    """hidden: (B,S,H)  features: (B,S,F)  categories: (B,F)  -> (B,S,O) float32."""
    B, S, H = hidden.shape
    Hp_, F, Fp, W, Wp, O = prepared["dims"]
    assert H == Hp_ and features.shape[-1] == F and categories.shape[-1] == F

    # ---- per-call: fold the broadcast category term of the enricher into a per-batch
    # bias.  ReLU((f + c) @ We + be) == ReLU(f @ We + (c @ We + be)).  Tiny matvec. ----
    cb = (categories.astype(jnp.float32) @ prepared["We_f32"]
          + prepared["be_f32"]).reshape(B, 1, Fp)

    tile_s = _choose_tile(S, B, tile_rows)
    grid = (B, pl.cdiv(S, tile_s))   # ragged tail handled by Pallas block masking

    row_spec = lambda d: pl.BlockSpec((None, tile_s, d), lambda b, i: (b, i, 0))
    cb_spec = pl.BlockSpec((None, 1, Fp), lambda b, i: (b, 0, 0))
    wspec = lambda shape: pl.BlockSpec(shape, lambda b, i: (0,) * len(shape))

    # VMEM budget: 2x a per-tile estimate, capped well below v7x's 64 MiB physical VMEM.
    vmem_est = (2 * tile_s * (H + F) * 4                 # double-buffered f32 activations
                + 2 * tile_s * O * 4                     # double-buffered f32 output
                + 2 * (F * Fp + H * Wp + Fp * Wp + Wp * O) * 2   # double-buffered bf16 weights
                + 4 * (Fp + Wp + O) * 4                  # biases / cb
                + tile_s * (Fp + Wp) * 6                 # f32 + bf16 intermediates
                + tile_s * (H + F) * 2)                  # bf16 casts of the activations
    vmem_limit = int(min(max(2 * vmem_est, 8 * 2**20), 48 * 2**20))

    return pl.pallas_call(
        concat_combine_kernel,
        out_shape=jax.ShapeDtypeStruct((B, S, O), jnp.float32),
        grid_spec=pltpu.PrefetchScalarGridSpec(
            num_scalar_prefetch=0,
            grid=grid,
            in_specs=[
                row_spec(H),        # hidden rows              (tile_s, H)  f32
                row_spec(F),        # feature rows             (tile_s, F)  f32
                cb_spec,            # per-batch enricher bias  (1, Fp)      f32
                wspec((F, Fp)),     # We   (enricher weight)   bf16
                wspec((H, Wp)),     # W1   (hidden half of the concat)
                wspec((Fp, Wp)),    # W1   (feature half of the concat)
                wspec((1, Wp)),     # b1   f32
                wspec((Wp, O)),     # W2   (compact output dim)
                wspec((1, O)),      # b2   f32
            ],
            out_specs=pl.BlockSpec((None, tile_s, O), lambda b, i: (b, i, 0)),
        ),
        compiler_params=pltpu.CompilerParams(
            dimension_semantics=("parallel", "parallel"),
            vmem_limit_bytes=vmem_limit),
    )(hidden, features, cb,
      prepared["We"], prepared["W1h"], prepared["W1f"],
      prepared["b1"], prepared["W2"], prepared["b2"])


def reference(hidden, features, categories, params):
    We, be, W1h, W1f, b1, W2, b2 = params
    feat = features + categories[:, None, :]
    feat = jnp.maximum(feat @ We + be, 0.0)
    x = jnp.maximum(hidden @ W1h + feat @ W1f + b1, 0.0)
    return x @ W2 + b2


if __name__ == "__main__":
    # Module hyper-params (small, consistent with the forward):
    B, S = 2, 8
    hidden_size, feature_size, out_size = 32, 32, 8
    waist_size = max(hidden_size, feature_size)   # layers=2, small=False

    key = jax.random.PRNGKey(0)
    ks = jax.random.split(key, 10)

    hidden = jax.random.normal(ks[0], (B, S, hidden_size), jnp.float32)
    features = jax.random.normal(ks[1], (B, S, feature_size), jnp.float32)
    categories = jax.random.normal(ks[2], (B, feature_size), jnp.float32)

    # Deterministic parameter init (synthetic; shapes from __init__).
    scale = 0.05
    We = scale * jax.random.normal(ks[3], (feature_size, feature_size), jnp.float32)
    be = scale * jax.random.normal(ks[4], (feature_size,), jnp.float32)
    W1h = scale * jax.random.normal(ks[5], (hidden_size, waist_size), jnp.float32)
    W1f = scale * jax.random.normal(ks[6], (feature_size, waist_size), jnp.float32)
    b1 = scale * jax.random.normal(ks[7], (waist_size,), jnp.float32)
    W2 = scale * jax.random.normal(ks[8], (waist_size, out_size), jnp.float32)
    b2 = scale * jax.random.normal(ks[9], (out_size,), jnp.float32)
    params = (We, be, W1h, W1f, b1, W2, b2)

    # One-time parameter preprocessing (per checkpoint), then the per-call kernel.
    prepared = prepare_params(params)
    out = concat_combine(hidden, features, categories, prepared)
    out = jax.block_until_ready(out)

    ref = reference(hidden, features, categories, params)
    assert out.shape == (B, S, out_size)
    # bf16 MXU operands (f32 accumulation) -> loosened tolerance vs. the f32 reference.
    assert jnp.allclose(out, ref, atol=2e-2, rtol=2e-2), "mismatch vs reference"

    print("KERNEL_OK")
</pallas_src>

<mosaic_0001>
module attributes {stable_mosaic.version = 11 : i64} {
  func.func @concat_combine_kernel(%arg0: i32, %arg1: i32, %arg2: memref<1x8x32xf32, #tpu.memory_space<vmem>>, %arg3: memref<1x8x32xf32, #tpu.memory_space<vmem>>, %arg4: memref<1x1x128xf32, #tpu.memory_space<vmem>>, %arg5: memref<32x128xbf16, #tpu.memory_space<vmem>>, %arg6: memref<32x128xbf16, #tpu.memory_space<vmem>>, %arg7: memref<128x128xbf16, #tpu.memory_space<vmem>>, %arg8: memref<1x128xf32, #tpu.memory_space<vmem>>, %arg9: memref<128x8xbf16, #tpu.memory_space<vmem>>, %arg10: memref<1x8xf32, #tpu.memory_space<vmem>>, %arg11: memref<1x8x8xf32, #tpu.memory_space<vmem>>) attributes {dimension_semantics = [#tpu.dimension_semantics<parallel>, #tpu.dimension_semantics<parallel>], iteration_bounds = array<i64: 2, 1>, scalar_prefetch = 0 : i64, scratch_operands = 0 : i64, tpu.core_type = #tpu.core_type<tc>, window_params = [{transform_indices = @transform_0, window_bounds = array<i64: 1, 8, 32>}, {transform_indices = @transform_1, window_bounds = array<i64: 1, 8, 32>}, {transform_indices = @transform_2, window_bounds = array<i64: 1, 1, 128>}, {pipeline_mode = #tpu.pipeline_mode<synchronous>, transform_indices = @transform_3, window_bounds = array<i64: 32, 128>}, {pipeline_mode = #tpu.pipeline_mode<synchronous>, transform_indices = @transform_4, window_bounds = array<i64: 32, 128>}, {pipeline_mode = #tpu.pipeline_mode<synchronous>, transform_indices = @transform_5, window_bounds = array<i64: 128, 128>}, {pipeline_mode = #tpu.pipeline_mode<synchronous>, transform_indices = @transform_6, window_bounds = array<i64: 1, 128>}, {pipeline_mode = #tpu.pipeline_mode<synchronous>, transform_indices = @transform_7, window_bounds = array<i64: 128, 8>}, {pipeline_mode = #tpu.pipeline_mode<synchronous>, transform_indices = @transform_8, window_bounds = array<i64: 1, 8>}, {transform_indices = @transform_9, window_bounds = array<i64: 1, 8, 8>}]} {
    %c0 = arith.constant 0 : index
    %c0_0 = arith.constant 0 : index
    %c0_1 = arith.constant 0 : index
    %0 = vector.load %arg2[%c0, %c0_0, %c0_1] : memref<1x8x32xf32, #tpu.memory_space<vmem>>, vector<1x8x32xf32>
    %1 = vector.shape_cast %0 : vector<1x8x32xf32> to vector<8x32xf32>
    %2 = arith.truncf %1 : vector<8x32xf32> to vector<8x32xbf16>
    %c0_2 = arith.constant 0 : index
    %c0_3 = arith.constant 0 : index
    %c0_4 = arith.constant 0 : index
    %3 = vector.load %arg3[%c0_2, %c0_3, %c0_4] : memref<1x8x32xf32, #tpu.memory_space<vmem>>, vector<1x8x32xf32>
    %4 = vector.shape_cast %3 : vector<1x8x32xf32> to vector<8x32xf32>
    %5 = arith.truncf %4 : vector<8x32xf32> to vector<8x32xbf16>
    %c0_5 = arith.constant 0 : index
    %c0_6 = arith.constant 0 : index
    %6 = vector.load %arg5[%c0_5, %c0_6] : memref<32x128xbf16, #tpu.memory_space<vmem>>, vector<32x128xbf16>
    %cst = arith.constant dense<0.000000e+00> : vector<8x128xf32>
    %7 = tpu.matmul %5, %6, %cst {dimension_numbers = #tpu.dot_dimension_numbers<[1], [0], [0], [1], [0, 0, 1, 1], [], []>} : vector<8x32xbf16>, vector<32x128xbf16>, vector<8x128xf32> -> vector<8x128xf32>
    %c0_7 = arith.constant 0 : index
    %c0_8 = arith.constant 0 : index
    %c0_9 = arith.constant 0 : index
    %8 = vector.load %arg4[%c0_7, %c0_8, %c0_9] : memref<1x1x128xf32, #tpu.memory_space<vmem>>, vector<1x1x128xf32>
    %9 = vector.shape_cast %8 : vector<1x1x128xf32> to vector<1x128xf32>
    %10 = vector.broadcast %9 : vector<1x128xf32> to vector<8x128xf32>
    %11 = arith.addf %7, %10 : vector<8x128xf32>
    %cst_10 = arith.constant 0.000000e+00 : f32
    %12 = vector.broadcast %cst_10 : f32 to vector<8x128xf32>
    %13 = arith.maximumf %11, %12 : vector<8x128xf32>
    %14 = arith.truncf %13 : vector<8x128xf32> to vector<8x128xbf16>
    %c0_11 = arith.constant 0 : index
    %c0_12 = arith.constant 0 : index
    %15 = vector.load %arg6[%c0_11, %c0_12] : memref<32x128xbf16, #tpu.memory_space<vmem>>, vector<32x128xbf16>
    %cst_13 = arith.constant dense<0.000000e+00> : vector<8x128xf32>
    %16 = tpu.matmul %2, %15, %cst_13 {dimension_numbers = #tpu.dot_dimension_numbers<[1], [0], [0], [1], [0, 0, 1, 1], [], []>} : vector<8x32xbf16>, vector<32x128xbf16>, vector<8x128xf32> -> vector<8x128xf32>
    %c0_14 = arith.constant 0 : index
    %c0_15 = arith.constant 0 : index
    %17 = vector.load %arg7[%c0_14, %c0_15] : memref<128x128xbf16, #tpu.memory_space<vmem>>, vector<128x128xbf16>
    %cst_16 = arith.constant dense<0.000000e+00> : vector<8x128xf32>
    %18 = tpu.matmul %14, %17, %cst_16 {dimension_numbers = #tpu.dot_dimension_numbers<[1], [0], [0], [1], [0, 0, 1, 1], [], []>} : vector<8x128xbf16>, vector<128x128xbf16>, vector<8x128xf32> -> vector<8x128xf32>
    %19 = arith.addf %16, %18 : vector<8x128xf32>
    %c0_17 = arith.constant 0 : index
    %c0_18 = arith.constant 0 : index
    %20 = vector.load %arg8[%c0_17, %c0_18] : memref<1x128xf32, #tpu.memory_space<vmem>>, vector<1x128xf32>
    %21 = vector.broadcast %20 : vector<1x128xf32> to vector<8x128xf32>
    %22 = arith.addf %19, %21 : vector<8x128xf32>
    %cst_19 = arith.constant 0.000000e+00 : f32
    %23 = vector.broadcast %cst_19 : f32 to vector<8x128xf32>
    %24 = arith.maximumf %22, %23 : vector<8x128xf32>
    %25 = arith.truncf %24 : vector<8x128xf32> to vector<8x128xbf16>
    %c0_20 = arith.constant 0 : index
    %c0_21 = arith.constant 0 : index
    %26 = vector.load %arg9[%c0_20, %c0_21] : memref<128x8xbf16, #tpu.memory_space<vmem>>, vector<128x8xbf16>
    %cst_22 = arith.constant dense<0.000000e+00> : vector<8x8xf32>
    %27 = tpu.matmul %25, %26, %cst_22 {dimension_numbers = #tpu.dot_dimension_numbers<[1], [0], [0], [1], [0, 0, 1, 1], [], []>} : vector<8x128xbf16>, vector<128x8xbf16>, vector<8x8xf32> -> vector<8x8xf32>
    %c0_23 = arith.constant 0 : index
    %c0_24 = arith.constant 0 : index
    %28 = vector.load %arg10[%c0_23, %c0_24] : memref<1x8xf32, #tpu.memory_space<vmem>>, vector<1x8xf32>
    %29 = vector.broadcast %28 : vector<1x8xf32> to vector<8x8xf32>
    %30 = arith.addf %27, %29 : vector<8x8xf32>
    %c0_25 = arith.constant 0 : index
    %c0_26 = arith.constant 0 : index
    %c0_27 = arith.constant 0 : index
    %31 = vector.load %arg11[%c0_25, %c0_26, %c0_27] : memref<1x8x8xf32, #tpu.memory_space<vmem>>, vector<1x8x8xf32>
    %32 = vector.shape_cast %31 : vector<1x8x8xf32> to vector<8x8xf32>
    %33 = vector.shape_cast %30 : vector<8x8xf32> to vector<1x8x8xf32>
    tpu.vector_store %arg11[%c0_25, %c0_26, %c0_27], %33 {strides = array<i32>} : memref<1x8x8xf32, #tpu.memory_space<vmem>>, vector<1x8x8xf32>,
    return
  }
  func.func @transform_0(%arg0: i32, %arg1: i32) -> (i32, i32, i32) {
    %c0_i32 = arith.constant 0 : i32
    %c0_i32_0 = arith.constant 0 : i32
    return %arg0, %arg1, %c0_i32 : i32, i32, i32
  }
  func.func @transform_1(%arg0: i32, %arg1: i32) -> (i32, i32, i32) {
    %c0_i32 = arith.constant 0 : i32
    %c0_i32_0 = arith.constant 0 : i32
    return %arg0, %arg1, %c0_i32 : i32, i32, i32
  }
  func.func @transform_2(%arg0: i32, %arg1: i32) -> (i32, i32, i32) {
    %c0_i32 = arith.constant 0 : i32
    %c0_i32_0 = arith.constant 0 : i32
    %c0_i32_1 = arith.constant 0 : i32
    return %arg0, %c0_i32, %c0_i32_0 : i32, i32, i32
  }
  func.func @transform_3(%arg0: i32, %arg1: i32) -> (i32, i32) {
    %c0_i32 = arith.constant 0 : i32
    %c0_i32_0 = arith.constant 0 : i32
    %c0_i32_1 = arith.constant 0 : i32
    return %c0_i32, %c0_i32_0 : i32, i32
  }
  func.func @transform_4(%arg0: i32, %arg1: i32) -> (i32, i32) {
    %c0_i32 = arith.constant 0 : i32
    %c0_i32_0 = arith.constant 0 : i32
    %c0_i32_1 = arith.constant 0 : i32
    return %c0_i32, %c0_i32_0 : i32, i32
  }
  func.func @transform_5(%arg0: i32, %arg1: i32) -> (i32, i32) {
    %c0_i32 = arith.constant 0 : i32
    %c0_i32_0 = arith.constant 0 : i32
    %c0_i32_1 = arith.constant 0 : i32
    return %c0_i32, %c0_i32_0 : i32, i32
  }
  func.func @transform_6(%arg0: i32, %arg1: i32) -> (i32, i32) {
    %c0_i32 = arith.constant 0 : i32
    %c0_i32_0 = arith.constant 0 : i32
    %c0_i32_1 = arith.constant 0 : i32
    return %c0_i32, %c0_i32_0 : i32, i32
  }
  func.func @transform_7(%arg0: i32, %arg1: i32) -> (i32, i32) {
    %c0_i32 = arith.constant 0 : i32
    %c0_i32_0 = arith.constant 0 : i32
    %c0_i32_1 = arith.constant 0 : i32
    return %c0_i32, %c0_i32_0 : i32, i32
  }
  func.func @transform_8(%arg0: i32, %arg1: i32) -> (i32, i32) {
    %c0_i32 = arith.constant 0 : i32
    %c0_i32_0 = arith.constant 0 : i32
    %c0_i32_1 = arith.constant 0 : i32
    return %c0_i32, %c0_i32_0 : i32, i32
  }
  func.func @transform_9(%arg0: i32, %arg1: i32) -> (i32, i32, i32) {
    %c0_i32 = arith.constant 0 : i32
    %c0_i32_0 = arith.constant 0 : i32
    return %arg0, %arg1, %c0_i32 : i32, i32, i32
  }
}

</mosaic_0001>

<llo_original>
// kernel: tpu_custom_call.1
$region0: #{tpu_custom_call.1}
  #allocation0 [shape = 'u32[]', space=smem, size = 0x4, offset = 0x4, fixed_abs, tag = 'smem constant byte address 0x4 - core index']
  #allocation1 [shape = 'u32[144,128]{1,0:T(1,128)}', space=vmem, size = 0x12000, scoped, tag = 'internal scratch']
  %s0 = inlined_call_operand.vmem [shape: f32[2,8,32], index: 0, kind: input, shape index: {}]
  %s1 = inlined_call_operand.hbm [shape: f32[2,8,32], index: 1, kind: input, shape index: {}]
  %s2 = inlined_call_operand.vmem [shape: f32[2,1,128], index: 2, kind: input, shape index: {}]
  %s3 = inlined_call_operand.hbm [shape: bf16[32,128], index: 3, kind: input, shape index: {}]
  %s4 = inlined_call_operand.hbm [shape: bf16[32,128], index: 4, kind: input, shape index: {}]
  %s5 = inlined_call_operand.vmem [shape: bf16[128,128], index: 5, kind: input, shape index: {}]
  %s6 = inlined_call_operand.vmem [shape: f32[1,128], index: 6, kind: input, shape index: {}]
  %s7 = inlined_call_operand.vmem [shape: bf16[128,8], index: 7, kind: input, shape index: {}]
  %s8 = inlined_call_operand.vmem [shape: f32[1,8], index: 8, kind: input, shape index: {}]
  %s9 = inlined_call_operand.hbm [shape: f32[2,8,8], index: 9, kind: output, shape index: {}]
  %s10 = sld [smem:[#allocation0]]
  $region81: #{tpu_custom_call.1} parent=0
    _
  %s12 = ssub.s32 1, %s10
  %s13 = scalar_select 0, %s12, %s10
  $region1: #{tpu_custom_call.1} parent=0
    #allocation2 [shape = 'u8[8192]{0}', space=vmem, size = 0x2000, scoped, tag = 'input window, operand 1']
    #allocation3 [shape = 's32[2]{0}', space=sflag, size = 0x8, scoped, tag = 'scoped memory for tpu_custom_call.1']
    #allocation4 [shape = 's32[2]{0}', space=sflag, size = 0x8, scoped, tag = 'scoped memory for tpu_custom_call.1']
    #allocation5 [shape = 'u8[8192]{0}', space=vmem, size = 0x2000, scoped, tag = 'input window, operand 3, single buffered']
    #allocation6 [shape = 's32[1]{0}', space=sflag, size = 0x4, scoped, tag = 'scoped memory for tpu_custom_call.1']
    #allocation7 [shape = 'u8[8192]{0}', space=vmem, size = 0x2000, scoped, tag = 'input window, operand 4, single buffered']
    #allocation8 [shape = 'u8[8192]{0}', space=vmem, size = 0x2000, scoped, tag = 'output window, operand 0']
    %14 = vsyncpa [#allocation3], 0
    %s15 = scalar_lea.sflag [#allocation3], 1
    %16 = vsyncpa %s15, 0
    %17 = vsyncpa [#allocation6], 0
    %18 = vsyncpa [#allocation4], 0
    %s19 = scalar_lea.sflag [#allocation4], 1
    %20 = vsyncpa %s19, 0
    loop: start=0, step=1, limit=4
    $region2: #{tpu_custom_call.1} parent=1 // loop_pre_header
      _
    $region3: #{tpu_custom_call.1} parent=1 // loop_header
      %s22 = sphi 0, %s26
      %p23 = scmp.ge.s32.totalorder %s22, 4
      %s29 = sphi 0, %s41
      %s30 = sphi 0, %s37
      %s31 = sphi 0, %s29
      %s32 = sphi 0, %s30
      %s33 = sphi 0, %s31
      %s34 = sphi 0, %s32
      %s46 = sphi 0, %s48
      %s49 = sphi 0, %s46
      %s50 = sphi 0, %s49
      %s66 = sphi 0, %s50
      %s74 = sphi 0, %s76
      %s77 = sphi 0, %s74
      %s78 = sphi 0, %s77
      %s94 = sphi 0, %s78
      %s100 = sphi 0, %s102
      %s103 = sphi 0, %s100
      %s104 = sphi 0, %s103
      %s120 = sphi 0, %s104
      %s124 = sphi 0, %s124
      %s126 = sphi 0, %s124
      %s127 = sphi 0, %s126
      %s141 = sphi 0, %s127
      %s145 = sphi 0, %s145
      %s147 = sphi 0, %s145
      %s148 = sphi 0, %s147
      %s162 = sphi 0, %s148
      %s166 = sphi 0, %s166
      %s168 = sphi 0, %s166
      %s169 = sphi 0, %s168
      %s183 = sphi 0, %s169
      %s187 = sphi 0, %s187
      %s189 = sphi 0, %s187
      %s190 = sphi 0, %s189
      %s204 = sphi 0, %s190
      %s208 = sphi 0, %s208
      %s210 = sphi 0, %s208
      %s211 = sphi 0, %s210
      %s225 = sphi 0, %s211
      %s229 = sphi 0, %s229
      %s231 = sphi 0, %s229
      %s232 = sphi 0, %s231
      %s246 = sphi 0, %s232
      %s254 = sphi 0, %s256
      %s257 = sphi 0, %s254
      %s258 = sphi 0, %s257
      %s274 = sphi 0, %s258
    $region4: #{tpu_custom_call.1} parent=1 // loop_header_branch
      %25 = sbr.rel (%p23) target = $region8
    $region5: #{tpu_custom_call.1} parent=1 // loop_body
      %s27 = ssub.s32 %s22, 1
      %s28 = ssub.s32 %s22, 2
      %s35 = sadd.s32 1, %s30
      %p36 = scmp.ge.s32.totalorder %s35, 1
      %s37 = scalar_select %p36, 0, %s35
      %s38 = sadd.s32 1, %s29
      %s39 = scalar_select %p36, %s38, %s29
      %p40 = scmp.ge.s32.totalorder %s39, 2
      %s41 = scalar_select %p40, 0, %s39
      %s42 = ssub.s32 %s29, %s41
      %s43 = ssub.s32 %s30, %s37
      %s44 = sor.u32 %s42, %s43
      %p45 = scmp.eq.s32.totalorder %s44, 0
      %s47 = sadd.s32 %s46, 1
      %s48 = scalar_select %p45, %s46, %s47
      %p51 = pneg %p45
      %p52 = scmp.eq.s32.totalorder %s22, 1
      %p53 = por %p51, %p52
      %p54 = scmp.ne.s32.totalorder %s46, %s49
      %p55 = scmp.eq.s32.totalorder %s22, 0
      %p56 = por %p54, %p55
      %p57 = scmp.ne.s32.totalorder %s46, %s49
      %p58 = scmp.eq.s32.totalorder %s27, 1
      %p59 = por %p57, %p58
      %p60 = scmp.ne.s32.totalorder %s49, %s50
      %p61 = scmp.eq.s32.totalorder %s27, 0
      %p62 = por %p60, %p61
      %p63 = scmp.ne.s32.totalorder %s49, %s50
      %p64 = scmp.eq.s32.totalorder %s28, 1
      %p65 = por %p63, %p64
      %p67 = scmp.ne.s32.totalorder %s50, %s66
      %p68 = scmp.eq.s32.totalorder %s28, 0
      %p69 = por %p67, %p68
      %s70 = ssub.s32 %s29, %s41
      %s71 = ssub.s32 %s30, %s37
      %s72 = sor.u32 %s70, %s71
      %p73 = scmp.eq.s32.totalorder %s72, 0
      %s75 = sadd.s32 %s74, 1
      %s76 = scalar_select %p73, %s74, %s75
      %p79 = pneg %p73
      %p80 = scmp.eq.s32.totalorder %s22, 1
      %p81 = por %p79, %p80
      %p82 = scmp.ne.s32.totalorder %s74, %s77
      %p83 = scmp.eq.s32.totalorder %s22, 0
      %p84 = por %p82, %p83
      %p85 = scmp.ne.s32.totalorder %s74, %s77
      %p86 = scmp.eq.s32.totalorder %s27, 1
      %p87 = por %p85, %p86
      %p88 = scmp.ne.s32.totalorder %s77, %s78
      %p89 = scmp.eq.s32.totalorder %s27, 0
      %p90 = por %p88, %p89
      %p91 = scmp.ne.s32.totalorder %s77, %s78
      %p92 = scmp.eq.s32.totalorder %s28, 1
      %p93 = por %p91, %p92
      %p95 = scmp.ne.s32.totalorder %s78, %s94
      %p96 = scmp.eq.s32.totalorder %s28, 0
      %p97 = por %p95, %p96
      %s98 = ssub.s32 %s29, %s41
      %p99 = scmp.eq.s32.totalorder %s98, 0
      %s101 = sadd.s32 %s100, 1
      %s102 = scalar_select %p99, %s100, %s101
      %p105 = pneg %p99
      %p106 = scmp.eq.s32.totalorder %s22, 1
      %p107 = por %p105, %p106
      %p108 = scmp.ne.s32.totalorder %s100, %s103
      %p109 = scmp.eq.s32.totalorder %s22, 0
      %p110 = por %p108, %p109
      %p111 = scmp.ne.s32.totalorder %s100, %s103
      %p112 = scmp.eq.s32.totalorder %s27, 1
      %p113 = por %p111, %p112
      %p114 = scmp.ne.s32.totalorder %s103, %s104
      %p115 = scmp.eq.s32.totalorder %s27, 0
      %p116 = por %p114, %p115
      %p117 = scmp.ne.s32.totalorder %s103, %s104
      %p118 = scmp.eq.s32.totalorder %s28, 1
      %p119 = por %p117, %p118
      %p121 = scmp.ne.s32.totalorder %s104, %s120
      %p122 = scmp.eq.s32.totalorder %s28, 0
      %p123 = por %p121, %p122
      %s125 = sadd.s32 %s124, 1
      %p128 = scmp.eq.s32.totalorder %s22, 1
      %p129 = scmp.ne.s32.totalorder %s124, %s126
      %p130 = scmp.eq.s32.totalorder %s22, 0
      %p131 = por %p129, %p130
      %p132 = scmp.ne.s32.totalorder %s124, %s126
      %p133 = scmp.eq.s32.totalorder %s27, 1
      %p134 = por %p132, %p133
      %p135 = scmp.ne.s32.totalorder %s126, %s127
      %p136 = scmp.eq.s32.totalorder %s27, 0
      %p137 = por %p135, %p136
      %p138 = scmp.ne.s32.totalorder %s126, %s127
      %p139 = scmp.eq.s32.totalorder %s28, 1
      %p140 = por %p138, %p139
      %p142 = scmp.ne.s32.totalorder %s127, %s141
      %p143 = scmp.eq.s32.totalorder %s28, 0
      %p144 = por %p142, %p143
      %s146 = sadd.s32 %s145, 1
      %p149 = scmp.eq.s32.totalorder %s22, 1
      %p150 = scmp.ne.s32.totalorder %s145, %s147
      %p151 = scmp.eq.s32.totalorder %s22, 0
      %p152 = por %p150, %p151
      %p153 = scmp.ne.s32.totalorder %s145, %s147
      %p154 = scmp.eq.s32.totalorder %s27, 1
      %p155 = por %p153, %p154
      %p156 = scmp.ne.s32.totalorder %s147, %s148
      %p157 = scmp.eq.s32.totalorder %s27, 0
      %p158 = por %p156, %p157
      %p159 = scmp.ne.s32.totalorder %s147, %s148
      %p160 = scmp.eq.s32.totalorder %s28, 1
      %p161 = por %p159, %p160
      %p163 = scmp.ne.s32.totalorder %s148, %s162
      %p164 = scmp.eq.s32.totalorder %s28, 0
      %p165 = por %p163, %p164
      %s167 = sadd.s32 %s166, 1
      %p170 = scmp.eq.s32.totalorder %s22, 1
      %p171 = scmp.ne.s32.totalorder %s166, %s168
      %p172 = scmp.eq.s32.totalorder %s22, 0
      %p173 = por %p171, %p172
      %p174 = scmp.ne.s32.totalorder %s166, %s168
      %p175 = scmp.eq.s32.totalorder %s27, 1
      %p176 = por %p174, %p175
      %p177 = scmp.ne.s32.totalorder %s168, %s169
      %p178 = scmp.eq.s32.totalorder %s27, 0
      %p179 = por %p177, %p178
      %p180 = scmp.ne.s32.totalorder %s168, %s169
      %p181 = scmp.eq.s32.totalorder %s28, 1
      %p182 = por %p180, %p181
      %p184 = scmp.ne.s32.totalorder %s169, %s183
      %p185 = scmp.eq.s32.totalorder %s28, 0
      %p186 = por %p184, %p185
      %s188 = sadd.s32 %s187, 1
      %p191 = scmp.eq.s32.totalorder %s22, 1
      %p192 = scmp.ne.s32.totalorder %s187, %s189
      %p193 = scmp.eq.s32.totalorder %s22, 0
      %p194 = por %p192, %p193
      %p195 = scmp.ne.s32.totalorder %s187, %s189
      %p196 = scmp.eq.s32.totalorder %s27, 1
      %p197 = por %p195, %p196
      %p198 = scmp.ne.s32.totalorder %s189, %s190
      %p199 = scmp.eq.s32.totalorder %s27, 0
      %p200 = por %p198, %p199
      %p201 = scmp.ne.s32.totalorder %s189, %s190
      %p202 = scmp.eq.s32.totalorder %s28, 1
      %p203 = por %p201, %p202
      %p205 = scmp.ne.s32.totalorder %s190, %s204
      %p206 = scmp.eq.s32.totalorder %s28, 0
      %p207 = por %p205, %p206
      %s209 = sadd.s32 %s208, 1
      %p212 = scmp.eq.s32.totalorder %s22, 1
      %p213 = scmp.ne.s32.totalorder %s208, %s210
      %p214 = scmp.eq.s32.totalorder %s22, 0
      %p215 = por %p213, %p214
      %p216 = scmp.ne.s32.totalorder %s208, %s210
      %p217 = scmp.eq.s32.totalorder %s27, 1
      %p218 = por %p216, %p217
      %p219 = scmp.ne.s32.totalorder %s210, %s211
      %p220 = scmp.eq.s32.totalorder %s27, 0
      %p221 = por %p219, %p220
      %p222 = scmp.ne.s32.totalorder %s210, %s211
      %p223 = scmp.eq.s32.totalorder %s28, 1
      %p224 = por %p222, %p223
      %p226 = scmp.ne.s32.totalorder %s211, %s225
      %p227 = scmp.eq.s32.totalorder %s28, 0
      %p228 = por %p226, %p227
      %s230 = sadd.s32 %s229, 1
      %p233 = scmp.eq.s32.totalorder %s22, 1
      %p234 = scmp.ne.s32.totalorder %s229, %s231
      %p235 = scmp.eq.s32.totalorder %s22, 0
      %p236 = por %p234, %p235
      %p237 = scmp.ne.s32.totalorder %s229, %s231
      %p238 = scmp.eq.s32.totalorder %s27, 1
      %p239 = por %p237, %p238
      %p240 = scmp.ne.s32.totalorder %s231, %s232
      %p241 = scmp.eq.s32.totalorder %s27, 0
      %p242 = por %p240, %p241
      %p243 = scmp.ne.s32.totalorder %s231, %s232
      %p244 = scmp.eq.s32.totalorder %s28, 1
      %p245 = por %p243, %p244
      %p247 = scmp.ne.s32.totalorder %s232, %s246
      %p248 = scmp.eq.s32.totalorder %s28, 0
      %p249 = por %p247, %p248
      %s250 = ssub.s32 %s29, %s41
      %s251 = ssub.s32 %s30, %s37
      %s252 = sor.u32 %s250, %s251
      %p253 = scmp.eq.s32.totalorder %s252, 0
      %s255 = sadd.s32 %s254, 1
      %s256 = scalar_select %p253, %s254, %s255
      %p259 = pneg %p253
      %p260 = scmp.eq.s32.totalorder %s22, 1
      %p261 = por %p259, %p260
      %p262 = scmp.ne.s32.totalorder %s254, %s257
      %p263 = scmp.eq.s32.totalorder %s22, 0
      %p264 = por %p262, %p263
      %p265 = scmp.ne.s32.totalorder %s254, %s257
      %p266 = scmp.eq.s32.totalorder %s27, 1
      %p267 = por %p265, %p266
      %p268 = scmp.ne.s32.totalorder %s257, %s258
      %p269 = scmp.eq.s32.totalorder %s27, 0
      %p270 = por %p268, %p269
      %p271 = scmp.ne.s32.totalorder %s257, %s258
      %p272 = scmp.eq.s32.totalorder %s28, 1
      %p273 = por %p271, %p272
      %p275 = scmp.ne.s32.totalorder %s258, %s274
      %p276 = scmp.eq.s32.totalorder %s28, 0
      %p277 = por %p275, %p276
      %p278 = scmp.le.s32.totalorder 1, %s22
      %p279 = scmp.lt.s32.totalorder %s22, 3
      %p280 = pnand %p278, %p279
      %p281 = pneg %p280
      // Predicated region
      $region9: #{tpu_custom_call.1} parent=5 // pred_check
        _
      $region10: #{tpu_custom_call.1} parent=5 // pred_check_branch
        %283 = sbr.rel (%p280) target = $region12
      $region11: #{tpu_custom_call.1} parent=5 // pred_region
        %s284 = ssub.s32 %s22, 1
        // Predicated region
        $region13: #{tpu_custom_call.1} parent=11 // pred_check
          %p285 = pneg %p137
        $region14: #{tpu_custom_call.1} parent=11 // pred_check_branch
          %287 = sbr.rel (%p285) target = $region16
        $region15: #{tpu_custom_call.1} parent=11 // pred_region
          %s289 = ssub.s32 256, 256
          %290 = vsyncadd [#allocation6], %s289
          %s291 = sshll.u32 [#allocation5], 4
          %s292 = int_to_ptr.vmem [resolvable:$true] %s291
          %297 = dma.hbm_to_vmem [thread:$0]  %s3, 256, %s292, [#allocation6], 64, 64, 4
        $region16: #{tpu_custom_call.1} parent=11 // pred_fallthru
          _
        // Predicated region
        $region17: #{tpu_custom_call.1} parent=11 // pred_check
          %p298 = pneg %p158
        $region18: #{tpu_custom_call.1} parent=11 // pred_check_branch
          %300 = sbr.rel (%p298) target = $region20
        $region19: #{tpu_custom_call.1} parent=11 // pred_region
          %s302 = ssub.s32 256, 256
          %303 = vsyncadd [#allocation6], %s302
          %s304 = sshll.u32 [#allocation7], 4
          %s305 = int_to_ptr.vmem [resolvable:$true] %s304
          %310 = dma.hbm_to_vmem [thread:$0]  %s4, 256, %s305, [#allocation6], 64, 64, 4
        $region20: #{tpu_custom_call.1} parent=11 // pred_fallthru
          _
        // Predicated region
        $region21: #{tpu_custom_call.1} parent=11 // pred_check
          %p311 = pneg %p179
        $region22: #{tpu_custom_call.1} parent=11 // pred_check_branch
          %313 = sbr.rel (%p311) target = $region24
        $region23: #{tpu_custom_call.1} parent=11 // pred_region
          _
        $region24: #{tpu_custom_call.1} parent=11 // pred_fallthru
          _
        // Predicated region
        $region25: #{tpu_custom_call.1} parent=11 // pred_check
          %p314 = pneg %p200
        $region26: #{tpu_custom_call.1} parent=11 // pred_check_branch
          %316 = sbr.rel (%p314) target = $region28
        $region27: #{tpu_custom_call.1} parent=11 // pred_region
          _
        $region28: #{tpu_custom_call.1} parent=11 // pred_fallthru
          _
        // Predicated region
        $region29: #{tpu_custom_call.1} parent=11 // pred_check
          %p317 = pneg %p221
        $region30: #{tpu_custom_call.1} parent=11 // pred_check_branch
          %319 = sbr.rel (%p317) target = $region32
        $region31: #{tpu_custom_call.1} parent=11 // pred_region
          _
        $region32: #{tpu_custom_call.1} parent=11 // pred_fallthru
          _
        // Predicated region
        $region33: #{tpu_custom_call.1} parent=11 // pred_check
          %p320 = pneg %p242
        $region34: #{tpu_custom_call.1} parent=11 // pred_check_branch
          %322 = sbr.rel (%p320) target = $region36
        $region35: #{tpu_custom_call.1} parent=11 // pred_region
          _
        $region36: #{tpu_custom_call.1} parent=11 // pred_fallthru
          _
      $region12: #{tpu_custom_call.1} parent=5 // pred_fallthru
        _
      %p323 = scmp.lt.s32.totalorder %s22, 2
      // Predicated region
      $region37: #{tpu_custom_call.1} parent=5 // pred_check
        %p324 = pneg %p323
      $region38: #{tpu_custom_call.1} parent=5 // pred_check_branch
        %326 = sbr.rel (%p324) target = $region40
      $region39: #{tpu_custom_call.1} parent=5 // pred_region
        // Predicated region
        $region41: #{tpu_custom_call.1} parent=39 // pred_check
          %p327 = pneg %p56
        $region42: #{tpu_custom_call.1} parent=39 // pred_check_branch
          %329 = sbr.rel (%p327) target = $region44
        $region43: #{tpu_custom_call.1} parent=39 // pred_region
          %p330 = scmp.lt.s32.totalorder %s29, 1
          %s331 = scalar_select %p330, %s29, 1
          %p332 = scmp.lt.s32.totalorder %s30, 0
          %s333 = scalar_select %p332, %s30, 0
          %s334 = sadd.s32 %s333, %s331
          %s335 = smul.addr %s334, 8
          %s336 = scalar_lea.vmem %s0, %s335
        $region44: #{tpu_custom_call.1} parent=39 // pred_fallthru
          _
        // Predicated region
        $region45: #{tpu_custom_call.1} parent=39 // pred_check
          %p337 = pneg %p84
        $region46: #{tpu_custom_call.1} parent=39 // pred_check_branch
          %339 = sbr.rel (%p337) target = $region48
        $region47: #{tpu_custom_call.1} parent=39 // pred_region
          %s340 = sand.u32 %s74, 1
          %s341 = scalar_lea.sflag [#allocation3], %s340
          %s342 = sand.u32 %s74, 1
          %s343 = smul.addr %s342, 8
          %s344 = scalar_lea.vmem [#allocation2], %s343
          %s346 = ssub.s32 128, 128
          %347 = vsyncadd %s341, %s346
          %s348 = sadd.s32 %s30, %s29
          %s349 = smul.addr %s348, 128
          %s350 = scalar_lea.hbm %s1, %s349
          %s352 = sshll.u32 %s344, 4
          %s353 = int_to_ptr.vmem [resolvable:$true] %s352
          %355 = dma.hbm_to_vmem [thread:$0]  %s350, 128, %s353, %s341
        $region48: #{tpu_custom_call.1} parent=39 // pred_fallthru
          _
        // Predicated region
        $region49: #{tpu_custom_call.1} parent=39 // pred_check
          %p356 = pneg %p110
        $region50: #{tpu_custom_call.1} parent=39 // pred_check_branch
          %358 = sbr.rel (%p356) target = $region52
        $region51: #{tpu_custom_call.1} parent=39 // pred_region
          %p359 = scmp.lt.s32.totalorder %s29, 1
          %s360 = scalar_select %p359, %s29, 1
          %s361 = scalar_lea.vmem %s2, %s360
        $region52: #{tpu_custom_call.1} parent=39 // pred_fallthru
          _
      $region40: #{tpu_custom_call.1} parent=5 // pred_fallthru
        _
      %p362 = scmp.le.s32.totalorder 1, %s22
      %p363 = scmp.lt.s32.totalorder %s22, 3
      %p364 = pnand %p362, %p363
      %p365 = pneg %p364
      // Predicated region
      $region53: #{tpu_custom_call.1} parent=5 // pred_check
        _
      $region54: #{tpu_custom_call.1} parent=5 // pred_check_branch
        %367 = sbr.rel (%p364) target = $region56
      $region55: #{tpu_custom_call.1} parent=5 // pred_region
        %s368 = ssub.s32 %s22, 1
        %s369 = sand.u32 %s77, 1
        %s370 = scalar_lea.sflag [#allocation3], %s369
        %s371 = sand.u32 %s77, 1
        %s372 = smul.addr %s371, 8
        %s373 = scalar_lea.vmem [#allocation2], %s372
        // Predicated region
        $region57: #{tpu_custom_call.1} parent=55 // pred_check
          %p374 = pneg %p90
        $region58: #{tpu_custom_call.1} parent=55 // pred_check_branch
          %376 = sbr.rel (%p374) target = $region60
        $region59: #{tpu_custom_call.1} parent=55 // pred_region
          %377 = dma.done %s370, 128
        $region60: #{tpu_custom_call.1} parent=55 // pred_fallthru
          _
        // Predicated region
        $region61: #{tpu_custom_call.1} parent=55 // pred_check
          %p378 = pneg %p137
        $region62: #{tpu_custom_call.1} parent=55 // pred_check_branch
          %380 = sbr.rel (%p378) target = $region64
        $region63: #{tpu_custom_call.1} parent=55 // pred_region
          %381 = dma.done [#allocation6], 256
        $region64: #{tpu_custom_call.1} parent=55 // pred_fallthru
          _
        // Predicated region
        $region65: #{tpu_custom_call.1} parent=55 // pred_check
          %p382 = pneg %p158
        $region66: #{tpu_custom_call.1} parent=55 // pred_check_branch
          %384 = sbr.rel (%p382) target = $region68
        $region67: #{tpu_custom_call.1} parent=55 // pred_region
          %385 = dma.done [#allocation6], 256
        $region68: #{tpu_custom_call.1} parent=55 // pred_fallthru
          _
        %p386 = scmp.lt.s32.totalorder %s31, 1
        %s387 = scalar_select %p386, %s31, 1
        %p388 = scmp.lt.s32.totalorder %s32, 0
        %s389 = scalar_select %p388, %s32, 0
        %s390 = sadd.s32 %s389, %s387
        %s391 = smul.addr %s390, 8
        %s392 = scalar_lea.vmem %s0, %s391
        %p393 = pneg %p62
        %p394 = pneg %p59
        %s395 = sand.u32 %s77, 1
        %s396 = scalar_lea.sflag [#allocation3], %s395
        %s397 = sand.u32 %s77, 1
        %s398 = smul.addr %s397, 8
        %s399 = scalar_lea.vmem [#allocation2], %s398
        %p400 = pneg %p90
        %p401 = pneg %p87
        %p402 = scmp.lt.s32.totalorder %s31, 1
        %s403 = scalar_select %p402, %s31, 1
        %s404 = scalar_lea.vmem %s2, %s403
        %p405 = pneg %p116
        %p406 = pneg %p113
        %p407 = pneg %p137
        %p408 = pneg %p134
        %p409 = pneg %p158
        %p410 = pneg %p155
        %p411 = pneg %p179
        %p412 = pneg %p176
        %p413 = pneg %p200
        %p414 = pneg %p197
        %p415 = pneg %p221
        %p416 = pneg %p218
        %p417 = pneg %p242
        %p418 = pneg %p239
        %p419 = pneg %p270
        %p420 = pneg %p267
        %s421 = sand.u32 %s257, 1
        %s422 = scalar_lea.sflag [#allocation4], %s421
        %s423 = sand.u32 %s257, 1
        %s424 = smul.addr %s423, 8
        %s425 = scalar_lea.vmem [#allocation8], %s424
        %p426 = scmp.lt.s32.totalorder %s31, 1
        %s427 = scalar_select %p426, %s31, 1
        %p428 = scmp.lt.s32.totalorder %s32, 0
        %s429 = scalar_select %p428, %s32, 0
        %s430 = sadd.s32 %s429, %s427
        %s431 = smul.addr %s430, 8
        %s432 = scalar_lea.vmem %s0, %s431
        %p433 = scmp.lt.s32.totalorder %s31, 1
        %s434 = scalar_select %p433, %s31, 1
        %s435 = scalar_lea.vmem %s2, %s434
        %v437 = vld [vmem:[%s432] sm:$0xff]
        %v438 = vpack.c.bf16 %v437, %v437
        %v439 = vld [vmem:[%s373] sm:$0xff]
        %v440 = vpack.c.bf16 %v439, %v439
        %v441 = vld [vmem:[#allocation5] sm:$0xf]
        %v442 = vld [vmem:[#allocation5 + $0x4] sm:$0xf]
        %v443 = vld [vmem:[#allocation5 + $0x8] sm:$0xf]
        %v444 = vld [vmem:[#allocation5 + $0xc] sm:$0xf]
        %v445 = vld [vmem:[%s435] sm:$0x1]
        %v447 = vlaneseq
        %v448 = vshrl.u32 %v447, 7
        %v449 = vsub.s32 0, %v448
        %v450 = vrot.slane %v445, %v449
        %v456 = vunpack.c.l.b16 %v441
        %v457 = vunpack.c.l.b16 %v442
        %v458 = vunpack.c.l.b16 %v443
        %v459 = vunpack.c.l.b16 %v444
        %v460 = vpack.c.b16 %v457, %v456
        %v461 = vpack.c.b16 %v459, %v458
        %vm464 = vcmask 261120
        %v466 = vsel %vm464, %v440, 0
        %468 = vmatprep.subr.bf16.mxu0 0
        %469 = vmatpush1.bf16.msra.mxu0 %v460
        %470 = vmatprep.subr.bf16.mxu0 0
        %471 = vmatpush1.bf16.msra.mxu0 %v461
        %472 = vmatprep.subr.bf16.mxu0 0
        %473 = vmatpush1.bf16.msra.mxu0 0
        %474 = vmatprep.subr.bf16.mxu0 0
        %475 = vmatpush1.bf16.msra.mxu0 0
        %476 = vmatprep.subr.bf16.mxu0 0
        %477 = vmatpush1.bf16.msra.mxu0 0
        %478 = vmatprep.subr.bf16.mxu0 0
        %479 = vmatpush1.bf16.msra.mxu0 0
        %480 = vmatprep.subr.bf16.mxu0 0
        %481 = vmatpush1.bf16.msra.mxu0 0
        %482 = vmatprep.subr.bf16.mxu0 0
        %483 = vmatpush1.bf16.msra.mxu0 0
        %484 = vmatprep.subr.bf16.mxu0 0
        %485 = vmatpush1.bf16.msra.mxu0 0
        %486 = vmatprep.subr.bf16.mxu0 0
        %487 = vmatpush1.bf16.msra.mxu0 0
        %488 = vmatprep.subr.bf16.mxu0 0
        %489 = vmatpush1.bf16.msra.mxu0 0
        %490 = vmatprep.subr.bf16.mxu0 0
        %491 = vmatpush1.bf16.msra.mxu0 0
        %492 = vmatprep.subr.bf16.mxu0 0
        %493 = vmatpush1.bf16.msra.mxu0 0
        %494 = vmatprep.subr.bf16.mxu0 0
        %495 = vmatpush1.bf16.msra.mxu0 0
        %496 = vmatprep.subr.bf16.mxu0 0
        %497 = vmatpush1.bf16.msra.mxu0 0
        %498 = vmatprep.subr.bf16.mxu0 0
        %499 = vmatpush1.bf16.msra.mxu0 0
        %500 = vmatprep.mubr.bf16.mxu0 0
        %501 = vmatmul.mubr.bf16.gmra.mrb[0].mxu0 %v466
        %v502 = vpop.f32.mrb[0].mxu0
        %v503 = vadd.f32 %v450, %v502
        %v504 = vpop.f32.mrb[0].mxu0
        %v505 = vpop.f32.mrb[0].mxu0
        %v506 = vpop.f32.mrb[0].mxu0
        %507 = vdwg.mxu0
        %v508 = vmax.f32 %v503, 0.0
        %v509 = vpack.c.bf16 %v508, %v508
        %v510 = vld [vmem:[#allocation7] sm:$0xf]
        %v511 = vld [vmem:[#allocation7 + $0x4] sm:$0xf]
        %v512 = vld [vmem:[#allocation7 + $0x8] sm:$0xf]
        %v513 = vld [vmem:[#allocation7 + $0xc] sm:$0xf]
        %v514 = vld [vmem:[%s5] sm:$0xf]
        %v515 = vld [vmem:[%s5 + $0x4] sm:$0xf]
        %v516 = vld [vmem:[%s5 + $0x8] sm:$0xf]
        %v517 = vld [vmem:[%s5 + $0xc] sm:$0xf]
        %v518 = vld [vmem:[%s5 + $0x10] sm:$0xf]
        %v519 = vld [vmem:[%s5 + $0x14] sm:$0xf]
        %v520 = vld [vmem:[%s5 + $0x18] sm:$0xf]
        %v521 = vld [vmem:[%s5 + $0x1c] sm:$0xf]
        %v522 = vld [vmem:[%s5 + $0x20] sm:$0xf]
        %v523 = vld [vmem:[%s5 + $0x24] sm:$0xf]
        %v524 = vld [vmem:[%s5 + $0x28] sm:$0xf]
        %v525 = vld [vmem:[%s5 + $0x2c] sm:$0xf]
        %v526 = vld [vmem:[%s5 + $0x30] sm:$0xf]
        %v527 = vld [vmem:[%s5 + $0x34] sm:$0xf]
        %v528 = vld [vmem:[%s5 + $0x38] sm:$0xf]
        %v529 = vld [vmem:[%s5 + $0x3c] sm:$0xf]
        %v546 = vunpack.c.l.b16 %v514
        %v547 = vunpack.c.l.b16 %v515
        %v548 = vunpack.c.l.b16 %v516
        %v549 = vunpack.c.l.b16 %v517
        %v550 = vunpack.c.l.b16 %v518
        %v551 = vunpack.c.l.b16 %v519
        %v552 = vunpack.c.l.b16 %v520
        %v553 = vunpack.c.l.b16 %v521
        %v554 = vunpack.c.l.b16 %v522
        %v555 = vunpack.c.l.b16 %v523
        %v556 = vunpack.c.l.b16 %v524
        %v557 = vunpack.c.l.b16 %v525
        %v558 = vunpack.c.l.b16 %v526
        %v559 = vunpack.c.l.b16 %v527
        %v560 = vunpack.c.l.b16 %v528
        %v561 = vunpack.c.l.b16 %v529
        %v562 = vpack.c.b16 %v547, %v546
        %v563 = vpack.c.b16 %v549, %v548
        %v564 = vpack.c.b16 %v551, %v550
        %v565 = vpack.c.b16 %v553, %v552
        %v566 = vpack.c.b16 %v555, %v554
        %v567 = vpack.c.b16 %v557, %v556
        %v568 = vpack.c.b16 %v559, %v558
        %v569 = vpack.c.b16 %v561, %v560
        %578 = vmatprep.subr.bf16.mxu0 0
        %579 = vmatpush1.bf16.msra.mxu0 %v562
        %580 = vmatprep.subr.bf16.mxu0 0
        %581 = vmatpush1.bf16.msra.mxu0 %v563
        %582 = vmatprep.subr.bf16.mxu0 0
        %583 = vmatpush1.bf16.msra.mxu0 %v564
        %584 = vmatprep.subr.bf16.mxu0 0
        %585 = vmatpush1.bf16.msra.mxu0 %v565
        %586 = vmatprep.subr.bf16.mxu0 0
        %587 = vmatpush1.bf16.msra.mxu0 %v566
        %588 = vmatprep.subr.bf16.mxu0 0
        %589 = vmatpush1.bf16.msra.mxu0 %v567
        %590 = vmatprep.subr.bf16.mxu0 0
        %591 = vmatpush1.bf16.msra.mxu0 %v568
        %592 = vmatprep.subr.bf16.mxu0 0
        %593 = vmatpush1.bf16.msra.mxu0 %v569
        %594 = vmatprep.subr.bf16.mxu0 0
        %595 = vmatpush1.bf16.msra.mxu0 0
        %596 = vmatprep.subr.bf16.mxu0 0
        %597 = vmatpush1.bf16.msra.mxu0 0
        %598 = vmatprep.subr.bf16.mxu0 0
        %599 = vmatpush1.bf16.msra.mxu0 0
        %600 = vmatprep.subr.bf16.mxu0 0
        %601 = vmatpush1.bf16.msra.mxu0 0
        %602 = vmatprep.subr.bf16.mxu0 0
        %603 = vmatpush1.bf16.msra.mxu0 0
        %604 = vmatprep.subr.bf16.mxu0 0
        %605 = vmatpush1.bf16.msra.mxu0 0
        %606 = vmatprep.subr.bf16.mxu0 0
        %607 = vmatpush1.bf16.msra.mxu0 0
        %608 = vmatprep.subr.bf16.mxu0 0
        %609 = vmatpush1.bf16.msra.mxu0 0
        %610 = vmatprep.mubr.bf16.mxu0 0
        %611 = vmatmul.mubr.bf16.gmra.mrb[0].mxu0 %v509
        %v612 = vpop.f32.mrb[0].mxu0
        %v613 = vadd.f32 0.0, %v612
        %v614 = vpop.f32.mrb[0].mxu0
        %v615 = vpop.f32.mrb[0].mxu0
        %v616 = vpop.f32.mrb[0].mxu0
        %617 = vdwg.mxu0
        %v622 = vunpack.c.l.b16 %v510
        %v623 = vunpack.c.l.b16 %v511
        %v624 = vunpack.c.l.b16 %v512
        %v625 = vunpack.c.l.b16 %v513
        %v626 = vpack.c.b16 %v623, %v622
        %v627 = vpack.c.b16 %v625, %v624
        %v631 = vsel %vm464, %v438, 0
        %633 = vmatprep.subr.bf16.mxu0 0
        %634 = vmatpush1.bf16.msra.mxu0 %v626
        %635 = vmatprep.subr.bf16.mxu0 0
        %636 = vmatpush1.bf16.msra.mxu0 %v627
        %637 = vmatprep.subr.bf16.mxu0 0
        %638 = vmatpush1.bf16.msra.mxu0 0
        %639 = vmatprep.subr.bf16.mxu0 0
        %640 = vmatpush1.bf16.msra.mxu0 0
        %641 = vmatprep.subr.bf16.mxu0 0
        %642 = vmatpush1.bf16.msra.mxu0 0
        %643 = vmatprep.subr.bf16.mxu0 0
        %644 = vmatpush1.bf16.msra.mxu0 0
        %645 = vmatprep.subr.bf16.mxu0 0
        %646 = vmatpush1.bf16.msra.mxu0 0
        %647 = vmatprep.subr.bf16.mxu0 0
        %648 = vmatpush1.bf16.msra.mxu0 0
        %649 = vmatprep.subr.bf16.mxu0 0
        %650 = vmatpush1.bf16.msra.mxu0 0
        %651 = vmatprep.subr.bf16.mxu0 0
        %652 = vmatpush1.bf16.msra.mxu0 0
        %653 = vmatprep.subr.bf16.mxu0 0
        %654 = vmatpush1.bf16.msra.mxu0 0
        %655 = vmatprep.subr.bf16.mxu0 0
        %656 = vmatpush1.bf16.msra.mxu0 0
        %657 = vmatprep.subr.bf16.mxu0 0
        %658 = vmatpush1.bf16.msra.mxu0 0
        %659 = vmatprep.subr.bf16.mxu0 0
        %660 = vmatpush1.bf16.msra.mxu0 0
        %661 = vmatprep.subr.bf16.mxu0 0
        %662 = vmatpush1.bf16.msra.mxu0 0
        %663 = vmatprep.subr.bf16.mxu0 0
        %664 = vmatpush1.bf16.msra.mxu0 0
        %665 = vmatprep.mubr.bf16.mxu0 0
        %666 = vmatmul.mubr.bf16.gmra.mrb[0].mxu0 %v631
        %v667 = vpop.f32.mrb[0].mxu0
        %v668 = vadd.f32 %v613, %v667
        %v669 = vpop.f32.mrb[0].mxu0
        %v670 = vpop.f32.mrb[0].mxu0
        %v671 = vpop.f32.mrb[0].mxu0
        %672 = vdwg.mxu0
        %v673 = vld [vmem:[%s6] sm:$0x1]
        %v675 = vlaneseq
        %v676 = vshrl.u32 %v675, 7
        %v677 = vsub.s32 0, %v676
        %v678 = vrot.slane %v673, %v677
        %v680 = vadd.f32 %v668, %v678
        %v681 = vmax.f32 %v680, 0.0
        %v682 = vpack.c.bf16 %v681, %v681
        %v683 = vld [vmem:[%s7] sm:$0xf]
        %v684 = vld [vmem:[%s7 + $0x4] sm:$0xf]
        %v685 = vld [vmem:[%s7 + $0x8] sm:$0xf]
        %v686 = vld [vmem:[%s7 + $0xc] sm:$0xf]
        %v687 = vld [vmem:[%s7 + $0x10] sm:$0xf]
        %v688 = vld [vmem:[%s7 + $0x14] sm:$0xf]
        %v689 = vld [vmem:[%s7 + $0x18] sm:$0xf]
        %v690 = vld [vmem:[%s7 + $0x1c] sm:$0xf]
        %v691 = vld [vmem:[%s7 + $0x20] sm:$0xf]
        %v692 = vld [vmem:[%s7 + $0x24] sm:$0xf]
        %v693 = vld [vmem:[%s7 + $0x28] sm:$0xf]
        %v694 = vld [vmem:[%s7 + $0x2c] sm:$0xf]
        %v695 = vld [vmem:[%s7 + $0x30] sm:$0xf]
        %v696 = vld [vmem:[%s7 + $0x34] sm:$0xf]
        %v697 = vld [vmem:[%s7 + $0x38] sm:$0xf]
        %v698 = vld [vmem:[%s7 + $0x3c] sm:$0xf]
        %v699 = vld [vmem:[%s8] sm:$0x1]
        %v701 = vlaneseq
        %v702 = vshrl.u32 %v701, 7
        %v703 = vsub.s32 0, %v702
        %v704 = vrot.slane %v699, %v703
        %v722 = vunpack.c.l.b16 %v683
        %v723 = vunpack.c.l.b16 %v684
        %v724 = vunpack.c.l.b16 %v685
        %v725 = vunpack.c.l.b16 %v686
        %v726 = vunpack.c.l.b16 %v687
        %v727 = vunpack.c.l.b16 %v688
        %v728 = vunpack.c.l.b16 %v689
        %v729 = vunpack.c.l.b16 %v690
        %v730 = vunpack.c.l.b16 %v691
        %v731 = vunpack.c.l.b16 %v692
        %v732 = vunpack.c.l.b16 %v693
        %v733 = vunpack.c.l.b16 %v694
        %v734 = vunpack.c.l.b16 %v695
        %v735 = vunpack.c.l.b16 %v696
        %v736 = vunpack.c.l.b16 %v697
        %v737 = vunpack.c.l.b16 %v698
        %v738 = vpack.c.b16 %v723, %v722
        %v739 = vpack.c.b16 %v725, %v724
        %v740 = vpack.c.b16 %v727, %v726
        %v741 = vpack.c.b16 %v729, %v728
        %v742 = vpack.c.b16 %v731, %v730
        %v743 = vpack.c.b16 %v733, %v732
        %v744 = vpack.c.b16 %v735, %v734
        %v745 = vpack.c.b16 %v737, %v736
        %754 = vmatprep.subr.bf16.mxu0 0
        %755 = vmatpush1.bf16.msra.mxu0 %v738
        %756 = vmatprep.subr.bf16.mxu0 0
        %757 = vmatpush1.bf16.msra.mxu0 %v739
        %758 = vmatprep.subr.bf16.mxu0 0
        %759 = vmatpush1.bf16.msra.mxu0 %v740
        %760 = vmatprep.subr.bf16.mxu0 0
        %761 = vmatpush1.bf16.msra.mxu0 %v741
        %762 = vmatprep.subr.bf16.mxu0 0
        %763 = vmatpush1.bf16.msra.mxu0 %v742
        %764 = vmatprep.subr.bf16.mxu0 0
        %765 = vmatpush1.bf16.msra.mxu0 %v743
        %766 = vmatprep.subr.bf16.mxu0 0
        %767 = vmatpush1.bf16.msra.mxu0 %v744
        %768 = vmatprep.subr.bf16.mxu0 0
        %769 = vmatpush1.bf16.msra.mxu0 %v745
        %770 = vmatprep.subr.bf16.mxu0 0
        %771 = vmatpush1.bf16.msra.mxu0 0
        %772 = vmatprep.subr.bf16.mxu0 0
        %773 = vmatpush1.bf16.msra.mxu0 0
        %774 = vmatprep.subr.bf16.mxu0 0
        %775 = vmatpush1.bf16.msra.mxu0 0
        %776 = vmatprep.subr.bf16.mxu0 0
        %777 = vmatpush1.bf16.msra.mxu0 0
        %778 = vmatprep.subr.bf16.mxu0 0
        %779 = vmatpush1.bf16.msra.mxu0 0
        %780 = vmatprep.subr.bf16.mxu0 0
        %781 = vmatpush1.bf16.msra.mxu0 0
        %782 = vmatprep.subr.bf16.mxu0 0
        %783 = vmatpush1.bf16.msra.mxu0 0
        %784 = vmatprep.subr.bf16.mxu0 0
        %785 = vmatpush1.bf16.msra.mxu0 0
        %786 = vmatprep.mubr.bf16.mxu0 0
        %787 = vmatmul.mubr.bf16.gmra.mrb[0].mxu0 %v682
        %v788 = vpop.f32.mrb[0].mxu0
        %v789 = vadd.f32 %v704, %v788
        %v790 = vpop.f32.mrb[0].mxu0
        %v791 = vpop.f32.mrb[0].mxu0
        %v792 = vpop.f32.mrb[0].mxu0
        %793 = vdwg.mxu0
        %vm794 = vcmask 64512
        %795 = vst.msk [vmem:[%s425] sm:$0xff] %vm794, %v789
        %s796 = sand.u32 %s257, 1
        %s797 = scalar_lea.sflag [#allocation4], %s796
        %s798 = sand.u32 %s257, 1
        %s799 = smul.addr %s798, 8
        %s800 = scalar_lea.vmem [#allocation8], %s799
        // Predicated region
        $region69: #{tpu_custom_call.1} parent=55 // pred_check
          %p801 = pneg %p267
        $region70: #{tpu_custom_call.1} parent=55 // pred_check_branch
          %803 = sbr.rel (%p801) target = $region72
        $region71: #{tpu_custom_call.1} parent=55 // pred_region
          %s805 = ssub.s32 128, 128
          %806 = vsyncadd %s797, %s805
          %s807 = sadd.s32 %s32, %s31
          %s808 = smul.addr %s807, 128
          %s809 = scalar_lea.hbm %s9, %s808
          %s811 = sshll.u32 %s800, 4
          %s812 = int_to_ptr.vmem [resolvable:$true] %s811
          %814 = dma.vmem_to_hbm [thread:$0]  %s812, 128, %s809, %s797
        $region72: #{tpu_custom_call.1} parent=55 // pred_fallthru
          _
      $region56: #{tpu_custom_call.1} parent=5 // pred_fallthru
        _
      %p815 = scmp.le.s32.totalorder 2, %s22
      // Predicated region
      $region73: #{tpu_custom_call.1} parent=5 // pred_check
        %p816 = pneg %p815
      $region74: #{tpu_custom_call.1} parent=5 // pred_check_branch
        %818 = sbr.rel (%p816) target = $region76
      $region75: #{tpu_custom_call.1} parent=5 // pred_region
        %s819 = ssub.s32 %s22, 2
        // Predicated region
        $region77: #{tpu_custom_call.1} parent=75 // pred_check
          %p820 = pneg %p273
        $region78: #{tpu_custom_call.1} parent=75 // pred_check_branch
          %822 = sbr.rel (%p820) target = $region80
        $region79: #{tpu_custom_call.1} parent=75 // pred_region
          %s823 = sand.u32 %s258, 1
          %s824 = scalar_lea.sflag [#allocation4], %s823
          %s825 = sand.u32 %s258, 1
          %s826 = smul.addr %s825, 8
          %s827 = scalar_lea.vmem [#allocation8], %s826
          %828 = dma.done %s824, 128
        $region80: #{tpu_custom_call.1} parent=75 // pred_fallthru
          _
      $region76: #{tpu_custom_call.1} parent=5 // pred_fallthru
        _
    $region6: #{tpu_custom_call.1} parent=1 // loop_footer
      %s26 = sadd.s32 1, %s22
    $region7: #{tpu_custom_call.1} parent=1 // loop_footer_branch
      %21 = sbr.rel target = $region3
    $region8: #{tpu_custom_call.1} parent=1 // loop_exit
      _
    %829 = vsyncpa [#allocation3], 1
    %s830 = scalar_lea.sflag [#allocation3], 1
    %831 = vsyncpa %s830, 1
    %832 = vsyncpa [#allocation6], 1
    %833 = vsyncpa [#allocation4], 1
    %s834 = scalar_lea.sflag [#allocation4], 1
    %835 = vsyncpa %s834, 1

</llo_original>
